<compile_context>
chip_gen: v7x
topology: tpu7x:2x2x1
jax: 0.10.0
libtpu: 0.0.40
codegen_flags: <defaults>
</compile_context>

<pallas_src>
import math

import jax
import jax.numpy as jnp
from jax.experimental import pallas as pl
from jax.experimental.pallas import tpu as pltpu


def _mix_channel_kernel(x_ref, w_ref, o_ref):
    # x_ref: (Bt, C_in, TP)   batch-row block, pixel tile
    # w_ref: (C_in, C_out, TP)
    # o_ref: (Bt, C_out, TP)
    c_in = w_ref.shape[0]
    c_out = w_ref.shape[1]

    # Per output channel: accumulate a single (Bt, TP) f32 slab and store it
    # immediately.  Slices are read from the refs inside the loop so live vreg
    # state stays small (no full f32 copies of x / w / (Bt, C, TP) acc).
    for c in range(c_out):
        acc = (x_ref[:, 0, :].astype(jnp.float32)
               * w_ref[0, c:c + 1, :].astype(jnp.float32))       # (Bt,TP)*(1,TP)
        for i in range(1, c_in):                                  # static unroll
            acc = acc + (x_ref[:, i, :].astype(jnp.float32)
                         * w_ref[i, c:c + 1, :].astype(jnp.float32))
        o_ref[:, c, :] = acc.astype(o_ref.dtype)


def _round_up(x, m):
    return ((x + m - 1) // m) * m


def _sublane_multiple(itemsize):
    # Layout tile along the second-minor dim: 8 (f32), 16 (bf16), 32 (int8/fp8).
    return {4: 8, 2: 16, 1: 32}.get(itemsize, 8)


def _vmem_plan():
    """Return (tile VMEM budget bytes, vmem_limit_bytes) per TPU generation."""
    kind = ""
    try:
        kind = jax.devices()[0].device_kind.lower()
    except Exception:
        pass
    if "v7" in kind:
        # 64 MiB physical per TensorCore: leave headroom for Mosaic scratch.
        return 40 << 20, 48 << 20
    if "v6" in kind or "v5" in kind:
        # 128 MiB physical; raise the scoped limit well past the 16/32 MiB default.
        return 64 << 20, 100 << 20
    # Unknown generation: be conservative (v7x-safe).
    return 32 << 20, 48 << 20


def _padded_block_bytes(lead, second_minor, itemsize, tp):
    sub = _sublane_multiple(itemsize)
    return lead * _round_up(second_minor, sub) * tp * itemsize


def _footprint(bt, c, tp, x_isz, w_isz, o_isz):
    # Double-buffered x block + weight block + output block, sublane padding
    # included, per-tensor itemsize.
    return 2 * (_padded_block_bytes(bt, c, x_isz, tp)
                + _padded_block_bytes(c, c, w_isz, tp)
                + _padded_block_bytes(bt, c, o_isz, tp))


def _largest_divisor_leq(n, cap):
    for d in range(min(n, max(cap, 1)), 0, -1):
        if n % d == 0:
            return d
    return 1


def _pick_tiles(B, C, HW, x_isz, w_isz, o_isz, budget,
                max_batch_block=32, max_pixel_tile=8192):
    """Choose (batch rows per block, pixel tile, padded HW)."""
    # TODO(synk): use a cdiv grid with a masked batch tail instead of requiring
    # a divisor, so prime batch sizes still get large batch blocks.
    bt = _largest_divisor_leq(B, max_batch_block)
    hw128 = _round_up(HW, 128)

    def budget_tp(bt_):
        per_lane = _footprint(bt_, C, 1, x_isz, w_isz, o_isz)
        return (budget // per_lane) // 128 * 128

    # Shrink the batch block if even a 128-lane tile would blow the budget.
    while bt > 1 and budget_tp(bt) < 128:
        bt = _largest_divisor_leq(B, max(1, bt // 2))

    # Largest 128-multiple pixel tile under the padding-aware VMEM budget.
    # (If even 128 doesn't fit — enormous C — take 128 and rely on the raised
    # vmem_limit_bytes.)
    tp = max(128, min(max_pixel_tile, hw128, budget_tp(bt)))

    # Balance pixel tiles; keep >= 2 tiles when possible so both v7x
    # TensorCores get work on the "parallel" pixel axis.
    n_tiles = max(1, -(-HW // tp))
    if n_tiles == 1 and hw128 >= 256:
        n_tiles = 2
    tp = _round_up(-(-HW // n_tiles), 128)
    hw_pad = n_tiles * tp
    return bt, tp, hw_pad


def mix_channel_2d(x, weight, *, pixel_tile=None, batch_block=None):
    """x: (B, C, H, W), weight: (C, C, H, W) -> (B, C, H, W)."""
    B, C, H, W = x.shape
    assert weight.shape == (C, C, H, W), "weight must be (C, C, H, W)"
    HW = H * W
    x_isz = jnp.dtype(x.dtype).itemsize
    w_isz = jnp.dtype(weight.dtype).itemsize
    o_isz = x_isz

    budget, vmem_limit = _vmem_plan()
    auto_bt, auto_tp, hw_pad = _pick_tiles(B, C, HW, x_isz, w_isz, o_isz, budget)
    Bt = batch_block if batch_block is not None else auto_bt
    TP = pixel_tile if pixel_tile is not None else auto_tp
    if pixel_tile is not None:
        hw_pad = _round_up(HW, TP)
    assert B % Bt == 0, "batch must be divisible by the batch block"
    assert hw_pad % TP == 0

    xf = x.reshape(B, C, HW)
    wf = weight.reshape(C, C, HW)
    if hw_pad != HW:
        # Zero-pad the pixel axis so every tile is lane-dense and pipelined;
        # padded pixels are independent (per-pixel op) and sliced off below.
        pad = hw_pad - HW
        xf = jnp.pad(xf, ((0, 0), (0, 0), (0, pad)))
        wf = jnp.pad(wf, ((0, 0), (0, 0), (0, pad)))

    grid = (hw_pad // TP, B // Bt)  # pixel axis leading ("parallel"), batch inner

    cost = pl.CostEstimate(
        flops=2 * B * C * C * HW,
        transcendentals=0,
        bytes_accessed=(B * C * (x_isz + o_isz) + C * C * w_isz) * HW,
    )

    # TODO(synk): if a v7x profile shows exposed input DMA, bump the x-input
    # BlockSpec to pipeline_mode=pl.Buffered(3) (weight/output stay at 2).
    out = pl.pallas_call(
        _mix_channel_kernel,
        out_shape=jax.ShapeDtypeStruct((B, C, hw_pad), x.dtype),
        grid=grid,
        in_specs=[
            pl.BlockSpec((Bt, C, TP), lambda p, b: (b, 0, p)),
            # Constant block index across the inner batch loop -> weight DMA
            # happens once per pixel tile, not once per batch block.
            pl.BlockSpec((C, C, TP), lambda p, b: (0, 0, p)),
        ],
        out_specs=pl.BlockSpec((Bt, C, TP), lambda p, b: (b, 0, p)),
        compiler_params=pltpu.CompilerParams(
            dimension_semantics=("parallel", "arbitrary"),
            vmem_limit_bytes=vmem_limit,
        ),
        cost_estimate=cost,
    )(xf, wf)

    if hw_pad != HW:
        out = out[:, :, :HW]
    return out.reshape(B, C, H, W)


def init_weight(key, channels, x_res, y_res, dtype=jnp.float32):
    # Mirrors nn.init.kaiming_uniform_(w, a=sqrt(5)) for a (C, C, X, Y) tensor:
    # fan_in = C * X * Y, gain = sqrt(2/(1+5)), bound = gain * sqrt(3/fan_in)
    fan_in = channels * x_res * y_res
    gain = math.sqrt(2.0 / (1.0 + 5.0))
    bound = gain * math.sqrt(3.0 / fan_in)
    return jax.random.uniform(
        key, (channels, channels, x_res, y_res), dtype=dtype,
        minval=-bound, maxval=bound,
    )


if __name__ == "__main__":
    B, C, H, W = 2, 4, 16, 16
    key = jax.random.PRNGKey(0)
    kx, kw = jax.random.split(key)

    x = jax.random.normal(kx, (B, C, H, W), dtype=jnp.float32)
    weight = init_weight(kw, C, H, W, dtype=jnp.float32)

    out = mix_channel_2d(x, weight)
    out = jax.block_until_ready(out)

    # Reference: einsum('bixy,icxy->bcxy')
    ref = jnp.einsum("bixy,icxy->bcxy", x, weight)
    assert out.shape == (B, C, H, W)
    assert jnp.allclose(out, ref, atol=1e-5, rtol=1e-5)

    print("KERNEL_OK")
</pallas_src>

<mosaic_0001>
module attributes {stable_mosaic.version = 11 : i64} {
  func.func @_mix_channel_kernel(%arg0: i32, %arg1: i32, %arg2: memref<2x4x128xf32, #tpu.memory_space<vmem>>, %arg3: memref<4x4x128xf32, #tpu.memory_space<vmem>>, %arg4: memref<2x4x128xf32, #tpu.memory_space<vmem>>) attributes {dimension_semantics = [#tpu.dimension_semantics<parallel>, #tpu.dimension_semantics<arbitrary>], iteration_bounds = array<i64: 2, 1>, scalar_prefetch = 0 : i64, scratch_operands = 0 : i64, tpu.core_type = #tpu.core_type<tc>, window_params = [{transform_indices = @transform_0, window_bounds = array<i64: 2, 4, 128>}, {transform_indices = @transform_1, window_bounds = array<i64: 4, 4, 128>}, {transform_indices = @transform_2, window_bounds = array<i64: 2, 4, 128>}]} {
    %c0 = arith.constant 0 : index
    %c0_0 = arith.constant 0 : index
    %c0_1 = arith.constant 0 : index
    %0 = vector.load %arg2[%c0, %c0_0, %c0_1] : memref<2x4x128xf32, #tpu.memory_space<vmem>>, vector<2x1x128xf32>
    %1 = vector.shape_cast %0 : vector<2x1x128xf32> to vector<2x128xf32>
    %c0_2 = arith.constant 0 : index
    %c0_3 = arith.constant 0 : index
    %c0_4 = arith.constant 0 : index
    %2 = vector.load %arg3[%c0_2, %c0_3, %c0_4] : memref<4x4x128xf32, #tpu.memory_space<vmem>>, vector<1x1x128xf32>
    %3 = vector.shape_cast %2 : vector<1x1x128xf32> to vector<1x128xf32>
    %4 = vector.broadcast %3 : vector<1x128xf32> to vector<2x128xf32>
    %5 = arith.mulf %1, %4 : vector<2x128xf32>
    %c0_5 = arith.constant 0 : index
    %c1 = arith.constant 1 : index
    %c0_6 = arith.constant 0 : index
    %6 = vector.load %arg2[%c0_5, %c1, %c0_6] : memref<2x4x128xf32, #tpu.memory_space<vmem>>, vector<2x1x128xf32>
    %7 = vector.shape_cast %6 : vector<2x1x128xf32> to vector<2x128xf32>
    %c1_7 = arith.constant 1 : index
    %c0_8 = arith.constant 0 : index
    %c0_9 = arith.constant 0 : index
    %8 = vector.load %arg3[%c1_7, %c0_8, %c0_9] : memref<4x4x128xf32, #tpu.memory_space<vmem>>, vector<1x1x128xf32>
    %9 = vector.shape_cast %8 : vector<1x1x128xf32> to vector<1x128xf32>
    %10 = vector.broadcast %9 : vector<1x128xf32> to vector<2x128xf32>
    %11 = arith.mulf %7, %10 : vector<2x128xf32>
    %12 = arith.addf %5, %11 : vector<2x128xf32>
    %c0_10 = arith.constant 0 : index
    %c2 = arith.constant 2 : index
    %c0_11 = arith.constant 0 : index
    %13 = vector.load %arg2[%c0_10, %c2, %c0_11] : memref<2x4x128xf32, #tpu.memory_space<vmem>>, vector<2x1x128xf32>
    %14 = vector.shape_cast %13 : vector<2x1x128xf32> to vector<2x128xf32>
    %c2_12 = arith.constant 2 : index
    %c0_13 = arith.constant 0 : index
    %c0_14 = arith.constant 0 : index
    %15 = vector.load %arg3[%c2_12, %c0_13, %c0_14] : memref<4x4x128xf32, #tpu.memory_space<vmem>>, vector<1x1x128xf32>
    %16 = vector.shape_cast %15 : vector<1x1x128xf32> to vector<1x128xf32>
    %17 = vector.broadcast %16 : vector<1x128xf32> to vector<2x128xf32>
    %18 = arith.mulf %14, %17 : vector<2x128xf32>
    %19 = arith.addf %12, %18 : vector<2x128xf32>
    %c0_15 = arith.constant 0 : index
    %c3 = arith.constant 3 : index
    %c0_16 = arith.constant 0 : index
    %20 = vector.load %arg2[%c0_15, %c3, %c0_16] : memref<2x4x128xf32, #tpu.memory_space<vmem>>, vector<2x1x128xf32>
    %21 = vector.shape_cast %20 : vector<2x1x128xf32> to vector<2x128xf32>
    %c3_17 = arith.constant 3 : index
    %c0_18 = arith.constant 0 : index
    %c0_19 = arith.constant 0 : index
    %22 = vector.load %arg3[%c3_17, %c0_18, %c0_19] : memref<4x4x128xf32, #tpu.memory_space<vmem>>, vector<1x1x128xf32>
    %23 = vector.shape_cast %22 : vector<1x1x128xf32> to vector<1x128xf32>
    %24 = vector.broadcast %23 : vector<1x128xf32> to vector<2x128xf32>
    %25 = arith.mulf %21, %24 : vector<2x128xf32>
    %26 = arith.addf %19, %25 : vector<2x128xf32>
    %c0_20 = arith.constant 0 : index
    %c0_21 = arith.constant 0 : index
    %c0_22 = arith.constant 0 : index
    %27 = vector.load %arg4[%c0_20, %c0_21, %c0_22] : memref<2x4x128xf32, #tpu.memory_space<vmem>>, vector<2x1x128xf32>
    %28 = vector.shape_cast %27 : vector<2x1x128xf32> to vector<2x128xf32>
    %29 = vector.shape_cast %26 : vector<2x128xf32> to vector<2x1x128xf32>
    tpu.vector_store %arg4[%c0_20, %c0_21, %c0_22], %29 {strides = array<i32>} : memref<2x4x128xf32, #tpu.memory_space<vmem>>, vector<2x1x128xf32>,
    %c0_23 = arith.constant 0 : index
    %c0_24 = arith.constant 0 : index
    %c0_25 = arith.constant 0 : index
    %30 = vector.load %arg2[%c0_23, %c0_24, %c0_25] : memref<2x4x128xf32, #tpu.memory_space<vmem>>, vector<2x1x128xf32>
    %31 = vector.shape_cast %30 : vector<2x1x128xf32> to vector<2x128xf32>
    %c0_26 = arith.constant 0 : index
    %c1_27 = arith.constant 1 : index
    %c0_28 = arith.constant 0 : index
    %32 = vector.load %arg3[%c0_26, %c1_27, %c0_28] : memref<4x4x128xf32, #tpu.memory_space<vmem>>, vector<1x1x128xf32>
    %33 = vector.shape_cast %32 : vector<1x1x128xf32> to vector<1x128xf32>
    %34 = vector.broadcast %33 : vector<1x128xf32> to vector<2x128xf32>
    %35 = arith.mulf %31, %34 : vector<2x128xf32>
    %c0_29 = arith.constant 0 : index
    %c1_30 = arith.constant 1 : index
    %c0_31 = arith.constant 0 : index
    %36 = vector.load %arg2[%c0_29, %c1_30, %c0_31] : memref<2x4x128xf32, #tpu.memory_space<vmem>>, vector<2x1x128xf32>
    %37 = vector.shape_cast %36 : vector<2x1x128xf32> to vector<2x128xf32>
    %c1_32 = arith.constant 1 : index
    %c1_33 = arith.constant 1 : index
    %c0_34 = arith.constant 0 : index
    %38 = vector.load %arg3[%c1_32, %c1_33, %c0_34] : memref<4x4x128xf32, #tpu.memory_space<vmem>>, vector<1x1x128xf32>
    %39 = vector.shape_cast %38 : vector<1x1x128xf32> to vector<1x128xf32>
    %40 = vector.broadcast %39 : vector<1x128xf32> to vector<2x128xf32>
    %41 = arith.mulf %37, %40 : vector<2x128xf32>
    %42 = arith.addf %35, %41 : vector<2x128xf32>
    %c0_35 = arith.constant 0 : index
    %c2_36 = arith.constant 2 : index
    %c0_37 = arith.constant 0 : index
    %43 = vector.load %arg2[%c0_35, %c2_36, %c0_37] : memref<2x4x128xf32, #tpu.memory_space<vmem>>, vector<2x1x128xf32>
    %44 = vector.shape_cast %43 : vector<2x1x128xf32> to vector<2x128xf32>
    %c2_38 = arith.constant 2 : index
    %c1_39 = arith.constant 1 : index
    %c0_40 = arith.constant 0 : index
    %45 = vector.load %arg3[%c2_38, %c1_39, %c0_40] : memref<4x4x128xf32, #tpu.memory_space<vmem>>, vector<1x1x128xf32>
    %46 = vector.shape_cast %45 : vector<1x1x128xf32> to vector<1x128xf32>
    %47 = vector.broadcast %46 : vector<1x128xf32> to vector<2x128xf32>
    %48 = arith.mulf %44, %47 : vector<2x128xf32>
    %49 = arith.addf %42, %48 : vector<2x128xf32>
    %c0_41 = arith.constant 0 : index
    %c3_42 = arith.constant 3 : index
    %c0_43 = arith.constant 0 : index
    %50 = vector.load %arg2[%c0_41, %c3_42, %c0_43] : memref<2x4x128xf32, #tpu.memory_space<vmem>>, vector<2x1x128xf32>
    %51 = vector.shape_cast %50 : vector<2x1x128xf32> to vector<2x128xf32>
    %c3_44 = arith.constant 3 : index
    %c1_45 = arith.constant 1 : index
    %c0_46 = arith.constant 0 : index
    %52 = vector.load %arg3[%c3_44, %c1_45, %c0_46] : memref<4x4x128xf32, #tpu.memory_space<vmem>>, vector<1x1x128xf32>
    %53 = vector.shape_cast %52 : vector<1x1x128xf32> to vector<1x128xf32>
    %54 = vector.broadcast %53 : vector<1x128xf32> to vector<2x128xf32>
    %55 = arith.mulf %51, %54 : vector<2x128xf32>
    %56 = arith.addf %49, %55 : vector<2x128xf32>
    %c0_47 = arith.constant 0 : index
    %c1_48 = arith.constant 1 : index
    %c0_49 = arith.constant 0 : index
    %57 = vector.load %arg4[%c0_47, %c1_48, %c0_49] : memref<2x4x128xf32, #tpu.memory_space<vmem>>, vector<2x1x128xf32>
    %58 = vector.shape_cast %57 : vector<2x1x128xf32> to vector<2x128xf32>
    %59 = vector.shape_cast %56 : vector<2x128xf32> to vector<2x1x128xf32>
    tpu.vector_store %arg4[%c0_47, %c1_48, %c0_49], %59 {strides = array<i32>} : memref<2x4x128xf32, #tpu.memory_space<vmem>>, vector<2x1x128xf32>,
    %c0_50 = arith.constant 0 : index
    %c0_51 = arith.constant 0 : index
    %c0_52 = arith.constant 0 : index
    %60 = vector.load %arg2[%c0_50, %c0_51, %c0_52] : memref<2x4x128xf32, #tpu.memory_space<vmem>>, vector<2x1x128xf32>
    %61 = vector.shape_cast %60 : vector<2x1x128xf32> to vector<2x128xf32>
    %c0_53 = arith.constant 0 : index
    %c2_54 = arith.constant 2 : index
    %c0_55 = arith.constant 0 : index
    %62 = vector.load %arg3[%c0_53, %c2_54, %c0_55] : memref<4x4x128xf32, #tpu.memory_space<vmem>>, vector<1x1x128xf32>
    %63 = vector.shape_cast %62 : vector<1x1x128xf32> to vector<1x128xf32>
    %64 = vector.broadcast %63 : vector<1x128xf32> to vector<2x128xf32>
    %65 = arith.mulf %61, %64 : vector<2x128xf32>
    %c0_56 = arith.constant 0 : index
    %c1_57 = arith.constant 1 : index
    %c0_58 = arith.constant 0 : index
    %66 = vector.load %arg2[%c0_56, %c1_57, %c0_58] : memref<2x4x128xf32, #tpu.memory_space<vmem>>, vector<2x1x128xf32>
    %67 = vector.shape_cast %66 : vector<2x1x128xf32> to vector<2x128xf32>
    %c1_59 = arith.constant 1 : index
    %c2_60 = arith.constant 2 : index
    %c0_61 = arith.constant 0 : index
    %68 = vector.load %arg3[%c1_59, %c2_60, %c0_61] : memref<4x4x128xf32, #tpu.memory_space<vmem>>, vector<1x1x128xf32>
    %69 = vector.shape_cast %68 : vector<1x1x128xf32> to vector<1x128xf32>
    %70 = vector.broadcast %69 : vector<1x128xf32> to vector<2x128xf32>
    %71 = arith.mulf %67, %70 : vector<2x128xf32>
    %72 = arith.addf %65, %71 : vector<2x128xf32>
    %c0_62 = arith.constant 0 : index
    %c2_63 = arith.constant 2 : index
    %c0_64 = arith.constant 0 : index
    %73 = vector.load %arg2[%c0_62, %c2_63, %c0_64] : memref<2x4x128xf32, #tpu.memory_space<vmem>>, vector<2x1x128xf32>
    %74 = vector.shape_cast %73 : vector<2x1x128xf32> to vector<2x128xf32>
    %c2_65 = arith.constant 2 : index
    %c2_66 = arith.constant 2 : index
    %c0_67 = arith.constant 0 : index
    %75 = vector.load %arg3[%c2_65, %c2_66, %c0_67] : memref<4x4x128xf32, #tpu.memory_space<vmem>>, vector<1x1x128xf32>
    %76 = vector.shape_cast %75 : vector<1x1x128xf32> to vector<1x128xf32>
    %77 = vector.broadcast %76 : vector<1x128xf32> to vector<2x128xf32>
    %78 = arith.mulf %74, %77 : vector<2x128xf32>
    %79 = arith.addf %72, %78 : vector<2x128xf32>
    %c0_68 = arith.constant 0 : index
    %c3_69 = arith.constant 3 : index
    %c0_70 = arith.constant 0 : index
    %80 = vector.load %arg2[%c0_68, %c3_69, %c0_70] : memref<2x4x128xf32, #tpu.memory_space<vmem>>, vector<2x1x128xf32>
    %81 = vector.shape_cast %80 : vector<2x1x128xf32> to vector<2x128xf32>
    %c3_71 = arith.constant 3 : index
    %c2_72 = arith.constant 2 : index
    %c0_73 = arith.constant 0 : index
    %82 = vector.load %arg3[%c3_71, %c2_72, %c0_73] : memref<4x4x128xf32, #tpu.memory_space<vmem>>, vector<1x1x128xf32>
    %83 = vector.shape_cast %82 : vector<1x1x128xf32> to vector<1x128xf32>
    %84 = vector.broadcast %83 : vector<1x128xf32> to vector<2x128xf32>
    %85 = arith.mulf %81, %84 : vector<2x128xf32>
    %86 = arith.addf %79, %85 : vector<2x128xf32>
    %c0_74 = arith.constant 0 : index
    %c2_75 = arith.constant 2 : index
    %c0_76 = arith.constant 0 : index
    %87 = vector.load %arg4[%c0_74, %c2_75, %c0_76] : memref<2x4x128xf32, #tpu.memory_space<vmem>>, vector<2x1x128xf32>
    %88 = vector.shape_cast %87 : vector<2x1x128xf32> to vector<2x128xf32>
    %89 = vector.shape_cast %86 : vector<2x128xf32> to vector<2x1x128xf32>
    tpu.vector_store %arg4[%c0_74, %c2_75, %c0_76], %89 {strides = array<i32>} : memref<2x4x128xf32, #tpu.memory_space<vmem>>, vector<2x1x128xf32>,
    %c0_77 = arith.constant 0 : index
    %c0_78 = arith.constant 0 : index
    %c0_79 = arith.constant 0 : index
    %90 = vector.load %arg2[%c0_77, %c0_78, %c0_79] : memref<2x4x128xf32, #tpu.memory_space<vmem>>, vector<2x1x128xf32>
    %91 = vector.shape_cast %90 : vector<2x1x128xf32> to vector<2x128xf32>
    %c0_80 = arith.constant 0 : index
    %c3_81 = arith.constant 3 : index
    %c0_82 = arith.constant 0 : index
    %92 = vector.load %arg3[%c0_80, %c3_81, %c0_82] : memref<4x4x128xf32, #tpu.memory_space<vmem>>, vector<1x1x128xf32>
    %93 = vector.shape_cast %92 : vector<1x1x128xf32> to vector<1x128xf32>
    %94 = vector.broadcast %93 : vector<1x128xf32> to vector<2x128xf32>
    %95 = arith.mulf %91, %94 : vector<2x128xf32>
    %c0_83 = arith.constant 0 : index
    %c1_84 = arith.constant 1 : index
    %c0_85 = arith.constant 0 : index
    %96 = vector.load %arg2[%c0_83, %c1_84, %c0_85] : memref<2x4x128xf32, #tpu.memory_space<vmem>>, vector<2x1x128xf32>
    %97 = vector.shape_cast %96 : vector<2x1x128xf32> to vector<2x128xf32>
    %c1_86 = arith.constant 1 : index
    %c3_87 = arith.constant 3 : index
    %c0_88 = arith.constant 0 : index
    %98 = vector.load %arg3[%c1_86, %c3_87, %c0_88] : memref<4x4x128xf32, #tpu.memory_space<vmem>>, vector<1x1x128xf32>
    %99 = vector.shape_cast %98 : vector<1x1x128xf32> to vector<1x128xf32>
    %100 = vector.broadcast %99 : vector<1x128xf32> to vector<2x128xf32>
    %101 = arith.mulf %97, %100 : vector<2x128xf32>
    %102 = arith.addf %95, %101 : vector<2x128xf32>
    %c0_89 = arith.constant 0 : index
    %c2_90 = arith.constant 2 : index
    %c0_91 = arith.constant 0 : index
    %103 = vector.load %arg2[%c0_89, %c2_90, %c0_91] : memref<2x4x128xf32, #tpu.memory_space<vmem>>, vector<2x1x128xf32>
    %104 = vector.shape_cast %103 : vector<2x1x128xf32> to vector<2x128xf32>
    %c2_92 = arith.constant 2 : index
    %c3_93 = arith.constant 3 : index
    %c0_94 = arith.constant 0 : index
    %105 = vector.load %arg3[%c2_92, %c3_93, %c0_94] : memref<4x4x128xf32, #tpu.memory_space<vmem>>, vector<1x1x128xf32>
    %106 = vector.shape_cast %105 : vector<1x1x128xf32> to vector<1x128xf32>
    %107 = vector.broadcast %106 : vector<1x128xf32> to vector<2x128xf32>
    %108 = arith.mulf %104, %107 : vector<2x128xf32>
    %109 = arith.addf %102, %108 : vector<2x128xf32>
    %c0_95 = arith.constant 0 : index
    %c3_96 = arith.constant 3 : index
    %c0_97 = arith.constant 0 : index
    %110 = vector.load %arg2[%c0_95, %c3_96, %c0_97] : memref<2x4x128xf32, #tpu.memory_space<vmem>>, vector<2x1x128xf32>
    %111 = vector.shape_cast %110 : vector<2x1x128xf32> to vector<2x128xf32>
    %c3_98 = arith.constant 3 : index
    %c3_99 = arith.constant 3 : index
    %c0_100 = arith.constant 0 : index
    %112 = vector.load %arg3[%c3_98, %c3_99, %c0_100] : memref<4x4x128xf32, #tpu.memory_space<vmem>>, vector<1x1x128xf32>
    %113 = vector.shape_cast %112 : vector<1x1x128xf32> to vector<1x128xf32>
    %114 = vector.broadcast %113 : vector<1x128xf32> to vector<2x128xf32>
    %115 = arith.mulf %111, %114 : vector<2x128xf32>
    %116 = arith.addf %109, %115 : vector<2x128xf32>
    %c0_101 = arith.constant 0 : index
    %c3_102 = arith.constant 3 : index
    %c0_103 = arith.constant 0 : index
    %117 = vector.load %arg4[%c0_101, %c3_102, %c0_103] : memref<2x4x128xf32, #tpu.memory_space<vmem>>, vector<2x1x128xf32>
    %118 = vector.shape_cast %117 : vector<2x1x128xf32> to vector<2x128xf32>
    %119 = vector.shape_cast %116 : vector<2x128xf32> to vector<2x1x128xf32>
    tpu.vector_store %arg4[%c0_101, %c3_102, %c0_103], %119 {strides = array<i32>} : memref<2x4x128xf32, #tpu.memory_space<vmem>>, vector<2x1x128xf32>,
    return
  }
  func.func @transform_0(%arg0: i32, %arg1: i32) -> (i32, i32, i32) {
    %c0_i32 = arith.constant 0 : i32
    %c0_i32_0 = arith.constant 0 : i32
    return %arg1, %c0_i32, %arg0 : i32, i32, i32
  }
  func.func @transform_1(%arg0: i32, %arg1: i32) -> (i32, i32, i32) {
    %c0_i32 = arith.constant 0 : i32
    %c0_i32_0 = arith.constant 0 : i32
    %c0_i32_1 = arith.constant 0 : i32
    return %c0_i32, %c0_i32_0, %arg0 : i32, i32, i32
  }
  func.func @transform_2(%arg0: i32, %arg1: i32) -> (i32, i32, i32) {
    %c0_i32 = arith.constant 0 : i32
    %c0_i32_0 = arith.constant 0 : i32
    return %arg1, %c0_i32, %arg0 : i32, i32, i32
  }
}

</mosaic_0001>

<llo_original>
// kernel: tpu_custom_call.1
$region0: #{tpu_custom_call.1}
  #allocation0 [shape = 'u32[]', space=smem, size = 0x4, offset = 0x4, fixed_abs, tag = 'smem constant byte address 0x4 - core index']
  #allocation1 [shape = 'u32[144,128]{1,0:T(1,128)}', space=vmem, size = 0x12000, scoped, tag = 'internal scratch']
  %s0 = inlined_call_operand.hbm [shape: f32[2,4,256], index: 0, kind: input, shape index: {}]
  %s1 = inlined_call_operand.hbm [shape: f32[4,4,256], index: 1, kind: input, shape index: {}]
  %s2 = inlined_call_operand.hbm [shape: f32[2,4,256], index: 2, kind: output, shape index: {}]
  %s3 = sld [smem:[#allocation0]]
  $region49: #{tpu_custom_call.1} parent=0
    _
  %s5 = ssub.s32 1, %s3
  %s6 = scalar_select 0, %s5, %s3
  $region1: #{tpu_custom_call.1} parent=0
    #allocation2 [shape = 'u8[8192]{0}', space=vmem, size = 0x2000, scoped, tag = 'input window, operand 0']
    #allocation3 [shape = 's32[2]{0}', space=sflag, size = 0x8, scoped, tag = 'scoped memory for tpu_custom_call.1']
    #allocation4 [shape = 's32[2]{0}', space=sflag, size = 0x8, scoped, tag = 'scoped memory for tpu_custom_call.1']
    #allocation5 [shape = 'u8[16384]{0}', space=vmem, size = 0x4000, scoped, tag = 'input window, operand 1']
    #allocation6 [shape = 's32[2]{0}', space=sflag, size = 0x8, scoped, tag = 'scoped memory for tpu_custom_call.1']
    #allocation7 [shape = 'u8[8192]{0}', space=vmem, size = 0x2000, scoped, tag = 'output window, operand 0']
    %7 = vsyncpa [#allocation3], 0
    %s8 = scalar_lea.sflag [#allocation3], 1
    %9 = vsyncpa %s8, 0
    %10 = vsyncpa [#allocation6], 0
    %s11 = scalar_lea.sflag [#allocation6], 1
    %12 = vsyncpa %s11, 0
    %13 = vsyncpa [#allocation4], 0
    %s14 = scalar_lea.sflag [#allocation4], 1
    %15 = vsyncpa %s14, 0
    loop: start=0, step=1, limit=4
    $region2: #{tpu_custom_call.1} parent=1 // loop_pre_header
      _
    $region3: #{tpu_custom_call.1} parent=1 // loop_header
      %s17 = sphi 0, %s21
      %p18 = scmp.ge.s32.totalorder %s17, 4
      %s24 = sphi 0, %s36
      %s25 = sphi 0, %s32
      %s26 = sphi 0, %s24
      %s27 = sphi 0, %s25
      %s28 = sphi 0, %s26
      %s29 = sphi 0, %s27
      %s41 = sphi 0, %s43
      %s44 = sphi 0, %s41
      %s45 = sphi 0, %s44
      %s61 = sphi 0, %s45
      %s67 = sphi 0, %s69
      %s70 = sphi 0, %s67
      %s71 = sphi 0, %s70
      %s87 = sphi 0, %s71
      %s95 = sphi 0, %s97
      %s98 = sphi 0, %s95
      %s99 = sphi 0, %s98
      %s115 = sphi 0, %s99
    $region4: #{tpu_custom_call.1} parent=1 // loop_header_branch
      %20 = sbr.rel (%p18) target = $region8
    $region5: #{tpu_custom_call.1} parent=1 // loop_body
      %s22 = ssub.s32 %s17, 1
      %s23 = ssub.s32 %s17, 2
      %s30 = sadd.s32 1, %s25
      %p31 = scmp.ge.s32.totalorder %s30, 1
      %s32 = scalar_select %p31, 0, %s30
      %s33 = sadd.s32 1, %s24
      %s34 = scalar_select %p31, %s33, %s24
      %p35 = scmp.ge.s32.totalorder %s34, 2
      %s36 = scalar_select %p35, 0, %s34
      %s37 = ssub.s32 %s25, %s32
      %s38 = ssub.s32 %s24, %s36
      %s39 = sor.u32 %s37, %s38
      %p40 = scmp.eq.s32.totalorder %s39, 0
      %s42 = sadd.s32 %s41, 1
      %s43 = scalar_select %p40, %s41, %s42
      %p46 = pneg %p40
      %p47 = scmp.eq.s32.totalorder %s17, 1
      %p48 = por %p46, %p47
      %p49 = scmp.ne.s32.totalorder %s41, %s44
      %p50 = scmp.eq.s32.totalorder %s17, 0
      %p51 = por %p49, %p50
      %p52 = scmp.ne.s32.totalorder %s41, %s44
      %p53 = scmp.eq.s32.totalorder %s22, 1
      %p54 = por %p52, %p53
      %p55 = scmp.ne.s32.totalorder %s44, %s45
      %p56 = scmp.eq.s32.totalorder %s22, 0
      %p57 = por %p55, %p56
      %p58 = scmp.ne.s32.totalorder %s44, %s45
      %p59 = scmp.eq.s32.totalorder %s23, 1
      %p60 = por %p58, %p59
      %p62 = scmp.ne.s32.totalorder %s45, %s61
      %p63 = scmp.eq.s32.totalorder %s23, 0
      %p64 = por %p62, %p63
      %s65 = ssub.s32 %s24, %s36
      %p66 = scmp.eq.s32.totalorder %s65, 0
      %s68 = sadd.s32 %s67, 1
      %s69 = scalar_select %p66, %s67, %s68
      %p72 = pneg %p66
      %p73 = scmp.eq.s32.totalorder %s17, 1
      %p74 = por %p72, %p73
      %p75 = scmp.ne.s32.totalorder %s67, %s70
      %p76 = scmp.eq.s32.totalorder %s17, 0
      %p77 = por %p75, %p76
      %p78 = scmp.ne.s32.totalorder %s67, %s70
      %p79 = scmp.eq.s32.totalorder %s22, 1
      %p80 = por %p78, %p79
      %p81 = scmp.ne.s32.totalorder %s70, %s71
      %p82 = scmp.eq.s32.totalorder %s22, 0
      %p83 = por %p81, %p82
      %p84 = scmp.ne.s32.totalorder %s70, %s71
      %p85 = scmp.eq.s32.totalorder %s23, 1
      %p86 = por %p84, %p85
      %p88 = scmp.ne.s32.totalorder %s71, %s87
      %p89 = scmp.eq.s32.totalorder %s23, 0
      %p90 = por %p88, %p89
      %s91 = ssub.s32 %s25, %s32
      %s92 = ssub.s32 %s24, %s36
      %s93 = sor.u32 %s91, %s92
      %p94 = scmp.eq.s32.totalorder %s93, 0
      %s96 = sadd.s32 %s95, 1
      %s97 = scalar_select %p94, %s95, %s96
      %p100 = pneg %p94
      %p101 = scmp.eq.s32.totalorder %s17, 1
      %p102 = por %p100, %p101
      %p103 = scmp.ne.s32.totalorder %s95, %s98
      %p104 = scmp.eq.s32.totalorder %s17, 0
      %p105 = por %p103, %p104
      %p106 = scmp.ne.s32.totalorder %s95, %s98
      %p107 = scmp.eq.s32.totalorder %s22, 1
      %p108 = por %p106, %p107
      %p109 = scmp.ne.s32.totalorder %s98, %s99
      %p110 = scmp.eq.s32.totalorder %s22, 0
      %p111 = por %p109, %p110
      %p112 = scmp.ne.s32.totalorder %s98, %s99
      %p113 = scmp.eq.s32.totalorder %s23, 1
      %p114 = por %p112, %p113
      %p116 = scmp.ne.s32.totalorder %s99, %s115
      %p117 = scmp.eq.s32.totalorder %s23, 0
      %p118 = por %p116, %p117
      %p119 = scmp.le.s32.totalorder 1, %s17
      %p120 = scmp.lt.s32.totalorder %s17, 3
      %p121 = pnand %p119, %p120
      %p122 = pneg %p121
      // Predicated region
      $region9: #{tpu_custom_call.1} parent=5 // pred_check
        _
      $region10: #{tpu_custom_call.1} parent=5 // pred_check_branch
        %124 = sbr.rel (%p121) target = $region12
      $region11: #{tpu_custom_call.1} parent=5 // pred_region
        %s125 = ssub.s32 %s17, 1
      $region12: #{tpu_custom_call.1} parent=5 // pred_fallthru
        _
      %p126 = scmp.lt.s32.totalorder %s17, 2
      // Predicated region
      $region13: #{tpu_custom_call.1} parent=5 // pred_check
        %p127 = pneg %p126
      $region14: #{tpu_custom_call.1} parent=5 // pred_check_branch
        %129 = sbr.rel (%p127) target = $region16
      $region15: #{tpu_custom_call.1} parent=5 // pred_region
        // Predicated region
        $region17: #{tpu_custom_call.1} parent=15 // pred_check
          %p130 = pneg %p51
        $region18: #{tpu_custom_call.1} parent=15 // pred_check_branch
          %132 = sbr.rel (%p130) target = $region20
        $region19: #{tpu_custom_call.1} parent=15 // pred_region
          %s133 = sand.u32 %s41, 1
          %s134 = scalar_lea.sflag [#allocation3], %s133
          %s135 = sand.u32 %s41, 1
          %s136 = smul.addr %s135, 8
          %s137 = scalar_lea.vmem [#allocation2], %s136
          %s138 = smul.u32 2, %s25
          %s140 = ssub.s32 128, 128
          %141 = vsyncadd %s134, %s140
          %s142 = smul.addr %s138, 2
          %s143 = sadd.s32 %s24, %s142
          %s144 = smul.addr %s143, 64
          %s145 = scalar_lea.hbm %s0, %s144
          %s146 = sshll.u32 %s137, 4
          %s147 = int_to_ptr.vmem [resolvable:$true] %s146
          %152 = dma.hbm_to_vmem [thread:$0]  %s145, 128, %s147, %s134, 128, 64, 4
        $region20: #{tpu_custom_call.1} parent=15 // pred_fallthru
          _
        // Predicated region
        $region21: #{tpu_custom_call.1} parent=15 // pred_check
          %p153 = pneg %p77
        $region22: #{tpu_custom_call.1} parent=15 // pred_check_branch
          %155 = sbr.rel (%p153) target = $region24
        $region23: #{tpu_custom_call.1} parent=15 // pred_region
          %s156 = sand.u32 %s67, 1
          %s157 = scalar_lea.sflag [#allocation6], %s156
          %s158 = sand.u32 %s67, 1
          %s159 = smul.addr %s158, 16
          %s160 = scalar_lea.vmem [#allocation5], %s159
          %s162 = ssub.s32 256, 256
          %163 = vsyncadd %s157, %s162
          %s164 = smul.addr %s24, 64
          %s165 = scalar_lea.hbm %s1, %s164
          %s166 = sshll.u32 %s160, 4
          %s167 = int_to_ptr.vmem [resolvable:$true] %s166
          %172 = dma.hbm_to_vmem [thread:$0]  %s165, 256, %s167, %s157, 128, 64, 4
        $region24: #{tpu_custom_call.1} parent=15 // pred_fallthru
          _
      $region16: #{tpu_custom_call.1} parent=5 // pred_fallthru
        _
      %p173 = scmp.le.s32.totalorder 1, %s17
      %p174 = scmp.lt.s32.totalorder %s17, 3
      %p175 = pnand %p173, %p174
      %p176 = pneg %p175
      // Predicated region
      $region25: #{tpu_custom_call.1} parent=5 // pred_check
        _
      $region26: #{tpu_custom_call.1} parent=5 // pred_check_branch
        %178 = sbr.rel (%p175) target = $region28
      $region27: #{tpu_custom_call.1} parent=5 // pred_region
        %s179 = ssub.s32 %s17, 1
        %s180 = sand.u32 %s44, 1
        %s181 = scalar_lea.sflag [#allocation3], %s180
        %s182 = sand.u32 %s44, 1
        %s183 = smul.addr %s182, 8
        %s184 = scalar_lea.vmem [#allocation2], %s183
        // Predicated region
        $region29: #{tpu_custom_call.1} parent=27 // pred_check
          %p185 = pneg %p57
        $region30: #{tpu_custom_call.1} parent=27 // pred_check_branch
          %187 = sbr.rel (%p185) target = $region32
        $region31: #{tpu_custom_call.1} parent=27 // pred_region
          %188 = dma.done %s181, 128
        $region32: #{tpu_custom_call.1} parent=27 // pred_fallthru
          _
        %s189 = sand.u32 %s70, 1
        %s190 = scalar_lea.sflag [#allocation6], %s189
        %s191 = sand.u32 %s70, 1
        %s192 = smul.addr %s191, 16
        %s193 = scalar_lea.vmem [#allocation5], %s192
        // Predicated region
        $region33: #{tpu_custom_call.1} parent=27 // pred_check
          %p194 = pneg %p83
        $region34: #{tpu_custom_call.1} parent=27 // pred_check_branch
          %196 = sbr.rel (%p194) target = $region36
        $region35: #{tpu_custom_call.1} parent=27 // pred_region
          %197 = dma.done %s190, 256
        $region36: #{tpu_custom_call.1} parent=27 // pred_fallthru
          _
        %s198 = sand.u32 %s44, 1
        %s199 = scalar_lea.sflag [#allocation3], %s198
        %s200 = sand.u32 %s44, 1
        %s201 = smul.addr %s200, 8
        %s202 = scalar_lea.vmem [#allocation2], %s201
        %p203 = pneg %p57
        %p204 = pneg %p54
        %s205 = sand.u32 %s70, 1
        %s206 = scalar_lea.sflag [#allocation6], %s205
        %s207 = sand.u32 %s70, 1
        %s208 = smul.addr %s207, 16
        %s209 = scalar_lea.vmem [#allocation5], %s208
        %p210 = pneg %p83
        %p211 = pneg %p80
        %p212 = pneg %p111
        %p213 = pneg %p108
        %s214 = sand.u32 %s98, 1
        %s215 = scalar_lea.sflag [#allocation4], %s214
        %s216 = sand.u32 %s98, 1
        %s217 = smul.addr %s216, 8
        %s218 = scalar_lea.vmem [#allocation7], %s217
        %s219 = smul.u32 2, %s27
        %s220 = smul.u32 2, %s27
        %v221 = vld [vmem:[%s184] sm:$0x1]
        %v222 = vld [vmem:[%s184 + $0x4] sm:$0x1]
        %v223 = vld [vmem:[%s193] sm:$0x1]
        %v224 = vlaneseq
        %v225 = vshrl.u32 %v224, 7
        %v226 = vsub.s32 0, %v225
        %v227 = vrot.slane %v223, %v226
        %v228 = vmul.f32 %v221, %v227
        %v229 = vmul.f32 %v222, %v227
        %v230 = vld [vmem:[%s184 + $0x1] sm:$0x1]
        %v231 = vld [vmem:[%s184 + $0x5] sm:$0x1]
        %s232 = scalar_lea.vmem %s193, 4 [#allocation5]
        %v233 = vld [vmem:[%s232] sm:$0x1]
        %v234 = vlaneseq
        %v235 = vshrl.u32 %v234, 7
        %v236 = vsub.s32 0, %v235
        %v237 = vrot.slane %v233, %v236
        %v238 = vmul.f32 %v230, %v237
        %v239 = vmul.f32 %v231, %v237
        %v240 = vadd.f32 %v228, %v238
        %v241 = vadd.f32 %v229, %v239
        %v242 = vld [vmem:[%s184 + $0x2] sm:$0x1]
        %v243 = vld [vmem:[%s184 + $0x6] sm:$0x1]
        %s244 = scalar_lea.vmem %s193, 8 [#allocation5]
        %v245 = vld [vmem:[%s244] sm:$0x1]
        %v246 = vlaneseq
        %v247 = vshrl.u32 %v246, 7
        %v248 = vsub.s32 0, %v247
        %v249 = vrot.slane %v245, %v248
        %v250 = vmul.f32 %v242, %v249
        %v251 = vmul.f32 %v243, %v249
        %v252 = vadd.f32 %v240, %v250
        %v253 = vadd.f32 %v241, %v251
        %v254 = vld [vmem:[%s184 + $0x3] sm:$0x1]
        %v255 = vld [vmem:[%s184 + $0x7] sm:$0x1]
        %s256 = scalar_lea.vmem %s193, 12 [#allocation5]
        %v257 = vld [vmem:[%s256] sm:$0x1]
        %v258 = vlaneseq
        %v259 = vshrl.u32 %v258, 7
        %v260 = vsub.s32 0, %v259
        %v261 = vrot.slane %v257, %v260
        %v262 = vmul.f32 %v254, %v261
        %v263 = vmul.f32 %v255, %v261
        %v264 = vadd.f32 %v252, %v262
        %v265 = vadd.f32 %v253, %v263
        %266 = vst [vmem:[%s218] sm:$0x1] %v264
        %267 = vst [vmem:[%s218 + $0x4] sm:$0x1] %v265
        %v268 = vld [vmem:[%s184] sm:$0x1]
        %v269 = vld [vmem:[%s184 + $0x4] sm:$0x1]
        %v270 = vld [vmem:[%s193 + $0x1] sm:$0x1]
        %v271 = vlaneseq
        %v272 = vshrl.u32 %v271, 7
        %v273 = vsub.s32 0, %v272
        %v274 = vrot.slane %v270, %v273
        %v275 = vmul.f32 %v268, %v274
        %v276 = vmul.f32 %v269, %v274
        %v277 = vld [vmem:[%s184 + $0x1] sm:$0x1]
        %v278 = vld [vmem:[%s184 + $0x5] sm:$0x1]
        %v279 = vld [vmem:[%s232 + $0x1] sm:$0x1]
        %v280 = vlaneseq
        %v281 = vshrl.u32 %v280, 7
        %v282 = vsub.s32 0, %v281
        %v283 = vrot.slane %v279, %v282
        %v284 = vmul.f32 %v277, %v283
        %v285 = vmul.f32 %v278, %v283
        %v286 = vadd.f32 %v275, %v284
        %v287 = vadd.f32 %v276, %v285
        %v288 = vld [vmem:[%s184 + $0x2] sm:$0x1]
        %v289 = vld [vmem:[%s184 + $0x6] sm:$0x1]
        %v290 = vld [vmem:[%s244 + $0x1] sm:$0x1]
        %v291 = vlaneseq
        %v292 = vshrl.u32 %v291, 7
        %v293 = vsub.s32 0, %v292
        %v294 = vrot.slane %v290, %v293
        %v295 = vmul.f32 %v288, %v294
        %v296 = vmul.f32 %v289, %v294
        %v297 = vadd.f32 %v286, %v295
        %v298 = vadd.f32 %v287, %v296
        %v299 = vld [vmem:[%s184 + $0x3] sm:$0x1]
        %v300 = vld [vmem:[%s184 + $0x7] sm:$0x1]
        %v301 = vld [vmem:[%s256 + $0x1] sm:$0x1]
        %v302 = vlaneseq
        %v303 = vshrl.u32 %v302, 7
        %v304 = vsub.s32 0, %v303
        %v305 = vrot.slane %v301, %v304
        %v306 = vmul.f32 %v299, %v305
        %v307 = vmul.f32 %v300, %v305
        %v308 = vadd.f32 %v297, %v306
        %v309 = vadd.f32 %v298, %v307
        %310 = vst [vmem:[%s218 + $0x1] sm:$0x1] %v308
        %311 = vst [vmem:[%s218 + $0x5] sm:$0x1] %v309
        %v312 = vld [vmem:[%s184] sm:$0x1]
        %v313 = vld [vmem:[%s184 + $0x4] sm:$0x1]
        %v314 = vld [vmem:[%s193 + $0x2] sm:$0x1]
        %v315 = vlaneseq
        %v316 = vshrl.u32 %v315, 7
        %v317 = vsub.s32 0, %v316
        %v318 = vrot.slane %v314, %v317
        %v319 = vmul.f32 %v312, %v318
        %v320 = vmul.f32 %v313, %v318
        %v321 = vld [vmem:[%s184 + $0x1] sm:$0x1]
        %v322 = vld [vmem:[%s184 + $0x5] sm:$0x1]
        %v323 = vld [vmem:[%s232 + $0x2] sm:$0x1]
        %v324 = vlaneseq
        %v325 = vshrl.u32 %v324, 7
        %v326 = vsub.s32 0, %v325
        %v327 = vrot.slane %v323, %v326
        %v328 = vmul.f32 %v321, %v327
        %v329 = vmul.f32 %v322, %v327
        %v330 = vadd.f32 %v319, %v328
        %v331 = vadd.f32 %v320, %v329
        %v332 = vld [vmem:[%s184 + $0x2] sm:$0x1]
        %v333 = vld [vmem:[%s184 + $0x6] sm:$0x1]
        %v334 = vld [vmem:[%s244 + $0x2] sm:$0x1]
        %v335 = vlaneseq
        %v336 = vshrl.u32 %v335, 7
        %v337 = vsub.s32 0, %v336
        %v338 = vrot.slane %v334, %v337
        %v339 = vmul.f32 %v332, %v338
        %v340 = vmul.f32 %v333, %v338
        %v341 = vadd.f32 %v330, %v339
        %v342 = vadd.f32 %v331, %v340
        %v343 = vld [vmem:[%s184 + $0x3] sm:$0x1]
        %v344 = vld [vmem:[%s184 + $0x7] sm:$0x1]
        %v345 = vld [vmem:[%s256 + $0x2] sm:$0x1]
        %v346 = vlaneseq
        %v347 = vshrl.u32 %v346, 7
        %v348 = vsub.s32 0, %v347
        %v349 = vrot.slane %v345, %v348
        %v350 = vmul.f32 %v343, %v349
        %v351 = vmul.f32 %v344, %v349
        %v352 = vadd.f32 %v341, %v350
        %v353 = vadd.f32 %v342, %v351
        %354 = vst [vmem:[%s218 + $0x2] sm:$0x1] %v352
        %355 = vst [vmem:[%s218 + $0x6] sm:$0x1] %v353
        %v356 = vld [vmem:[%s184] sm:$0x1]
        %v357 = vld [vmem:[%s184 + $0x4] sm:$0x1]
        %v358 = vld [vmem:[%s193 + $0x3] sm:$0x1]
        %v359 = vlaneseq
        %v360 = vshrl.u32 %v359, 7
        %v361 = vsub.s32 0, %v360
        %v362 = vrot.slane %v358, %v361
        %v363 = vmul.f32 %v356, %v362
        %v364 = vmul.f32 %v357, %v362
        %v365 = vld [vmem:[%s184 + $0x1] sm:$0x1]
        %v366 = vld [vmem:[%s184 + $0x5] sm:$0x1]
        %v367 = vld [vmem:[%s232 + $0x3] sm:$0x1]
        %v368 = vlaneseq
        %v369 = vshrl.u32 %v368, 7
        %v370 = vsub.s32 0, %v369
        %v371 = vrot.slane %v367, %v370
        %v372 = vmul.f32 %v365, %v371
        %v373 = vmul.f32 %v366, %v371
        %v374 = vadd.f32 %v363, %v372
        %v375 = vadd.f32 %v364, %v373
        %v376 = vld [vmem:[%s184 + $0x2] sm:$0x1]
        %v377 = vld [vmem:[%s184 + $0x6] sm:$0x1]
        %v378 = vld [vmem:[%s244 + $0x3] sm:$0x1]
        %v379 = vlaneseq
        %v380 = vshrl.u32 %v379, 7
        %v381 = vsub.s32 0, %v380
        %v382 = vrot.slane %v378, %v381
        %v383 = vmul.f32 %v376, %v382
        %v384 = vmul.f32 %v377, %v382
        %v385 = vadd.f32 %v374, %v383
        %v386 = vadd.f32 %v375, %v384
        %v387 = vld [vmem:[%s184 + $0x3] sm:$0x1]
        %v388 = vld [vmem:[%s184 + $0x7] sm:$0x1]
        %v389 = vld [vmem:[%s256 + $0x3] sm:$0x1]
        %v390 = vlaneseq
        %v391 = vshrl.u32 %v390, 7
        %v392 = vsub.s32 0, %v391
        %v393 = vrot.slane %v389, %v392
        %v394 = vmul.f32 %v387, %v393
        %v395 = vmul.f32 %v388, %v393
        %v396 = vadd.f32 %v385, %v394
        %v397 = vadd.f32 %v386, %v395
        %398 = vst [vmem:[%s218 + $0x3] sm:$0x1] %v396
        %399 = vst [vmem:[%s218 + $0x7] sm:$0x1] %v397
        %s400 = sand.u32 %s98, 1
        %s401 = scalar_lea.sflag [#allocation4], %s400
        %s402 = sand.u32 %s98, 1
        %s403 = smul.addr %s402, 8
        %s404 = scalar_lea.vmem [#allocation7], %s403
        // Predicated region
        $region37: #{tpu_custom_call.1} parent=27 // pred_check
          %p405 = pneg %p108
        $region38: #{tpu_custom_call.1} parent=27 // pred_check_branch
          %407 = sbr.rel (%p405) target = $region40
        $region39: #{tpu_custom_call.1} parent=27 // pred_region
          %s408 = smul.u32 2, %s27
          %s410 = ssub.s32 128, 128
          %411 = vsyncadd %s401, %s410
          %s412 = smul.addr %s408, 2
          %s413 = sadd.s32 %s26, %s412
          %s414 = smul.addr %s413, 64
          %s415 = scalar_lea.hbm %s2, %s414
          %s416 = sshll.u32 %s404, 4
          %s417 = int_to_ptr.vmem [resolvable:$true] %s416
          %422 = dma.vmem_to_hbm [thread:$0]  %s417, 128, %s415, %s401, 64, 128, 4
        $region40: #{tpu_custom_call.1} parent=27 // pred_fallthru
          _
      $region28: #{tpu_custom_call.1} parent=5 // pred_fallthru
        _
      %p423 = scmp.le.s32.totalorder 2, %s17
      // Predicated region
      $region41: #{tpu_custom_call.1} parent=5 // pred_check
        %p424 = pneg %p423
      $region42: #{tpu_custom_call.1} parent=5 // pred_check_branch
        %426 = sbr.rel (%p424) target = $region44
      $region43: #{tpu_custom_call.1} parent=5 // pred_region
        %s427 = ssub.s32 %s17, 2
        // Predicated region
        $region45: #{tpu_custom_call.1} parent=43 // pred_check
          %p428 = pneg %p114
        $region46: #{tpu_custom_call.1} parent=43 // pred_check_branch
          %430 = sbr.rel (%p428) target = $region48
        $region47: #{tpu_custom_call.1} parent=43 // pred_region
          %s431 = sand.u32 %s99, 1
          %s432 = scalar_lea.sflag [#allocation4], %s431
          %s433 = sand.u32 %s99, 1
          %s434 = smul.addr %s433, 8
          %s435 = scalar_lea.vmem [#allocation7], %s434
          %436 = dma.done %s432, 128
        $region48: #{tpu_custom_call.1} parent=43 // pred_fallthru
          _
      $region44: #{tpu_custom_call.1} parent=5 // pred_fallthru
        _
    $region6: #{tpu_custom_call.1} parent=1 // loop_footer
      %s21 = sadd.s32 1, %s17
    $region7: #{tpu_custom_call.1} parent=1 // loop_footer_branch
      %16 = sbr.rel target = $region3
    $region8: #{tpu_custom_call.1} parent=1 // loop_exit
      _
    %437 = vsyncpa [#allocation3], 1
    %s438 = scalar_lea.sflag [#allocation3], 1
    %439 = vsyncpa %s438, 1
    %440 = vsyncpa [#allocation6], 1
    %s441 = scalar_lea.sflag [#allocation6], 1
    %442 = vsyncpa %s441, 1
    %443 = vsyncpa [#allocation4], 1
    %s444 = scalar_lea.sflag [#allocation4], 1
    %445 = vsyncpa %s444, 1

</llo_original>
